<compile_context>
chip_gen: v7x
topology: tpu7x:2x2x1
jax: 0.10.0
libtpu: 0.0.40
codegen_flags: <defaults>
</compile_context>

<pallas_src>
import jax
import jax.numpy as jnp
from jax.experimental import pallas as pl
from jax.experimental.pallas import tpu as pltpu


def _concat_dma_kernel(ev_ref, et_ref, av_ref, at_ref, emb_o_ref, att_o_ref, sems):
    """Four HBM->HBM strided DMAs: each input half lands in its output slice.

    No VMEM staging and no vector loads/stores; the TensorCore only issues DMA
    descriptors and waits on their semaphores.
    """
    he = ev_ref.shape[1]
    ht = et_ref.shape[1]
    sa = av_ref.shape[1]
    st = at_ref.shape[1]

    # TODO(synk): split points he / sa that are not 128-multiples rely on the
    # DMA engine's strided-copy support; standard transformer widths (and the
    # demo below) are 128-aligned so the copies hit tile boundaries exactly.
    copies = (
        pltpu.make_async_copy(ev_ref, emb_o_ref.at[:, pl.ds(0, he)], sems.at[0]),
        pltpu.make_async_copy(et_ref, emb_o_ref.at[:, pl.ds(he, ht)], sems.at[1]),
        pltpu.make_async_copy(av_ref, att_o_ref.at[:, pl.ds(0, sa)], sems.at[2]),
        pltpu.make_async_copy(at_ref, att_o_ref.at[:, pl.ds(sa, st)], sems.at[3]),
    )
    for cp in copies:   # issue all four, then wait: the four DMAs overlap.
        cp.start()
    for cp in copies:
        cp.wait()


class SimpleQuestionConcatenation:
    """JAX/Pallas port of conceptBert's SimpleQuestionConcatenation.

    The original module has no learnable parameters (its __init__ only prints
    'TBD'), so there is nothing to initialize.
    """

    def __init__(self, config=None):
        del config

    def __call__(self, emb_vilbert, att_vilbert, emb_transformer, att_transformer):
        assert emb_vilbert.ndim == 2 and emb_transformer.ndim == 2
        assert att_vilbert.ndim == 2 and att_transformer.ndim == 2
        b = emb_vilbert.shape[0]
        assert emb_transformer.shape[0] == b
        assert att_vilbert.shape[0] == b and att_transformer.shape[0] == b

        he, ht = emb_vilbert.shape[1], emb_transformer.shape[1]
        sa, st = att_vilbert.shape[1], att_transformer.shape[1]

        # DMAs cannot cast, so promote mixed-precision halves in the wrapper
        # (no-op astype when dtypes already match).
        # TODO(synk): torch.cat would not silently promote mismatched dtypes;
        # promotion chosen here so mixed-precision inputs still work.
        emb_dtype = jnp.result_type(emb_vilbert.dtype, emb_transformer.dtype)
        att_dtype = jnp.result_type(att_vilbert.dtype, att_transformer.dtype)
        ev = emb_vilbert.astype(emb_dtype)
        et = emb_transformer.astype(emb_dtype)
        av = att_vilbert.astype(att_dtype)
        at = att_transformer.astype(att_dtype)

        emb_out_shape = (b, he + ht)
        att_out_shape = (b, sa + st)

        # Pure copy: bytes read == bytes written; tell XLA so it can overlap.
        in_bytes = sum(a.size * jnp.dtype(a.dtype).itemsize for a in (ev, et, av, at))
        cost = pl.CostEstimate(flops=0, transcendentals=0, bytes_accessed=2 * in_bytes)

        emb_out, att_out = pl.pallas_call(
            _concat_dma_kernel,
            out_shape=(
                jax.ShapeDtypeStruct(emb_out_shape, emb_dtype),
                jax.ShapeDtypeStruct(att_out_shape, att_dtype),
            ),
            in_specs=[
                pl.BlockSpec(memory_space=pl.ANY),
                pl.BlockSpec(memory_space=pl.ANY),
                pl.BlockSpec(memory_space=pl.ANY),
                pl.BlockSpec(memory_space=pl.ANY),
            ],
            out_specs=(
                pl.BlockSpec(memory_space=pl.ANY),
                pl.BlockSpec(memory_space=pl.ANY),
            ),
            scratch_shapes=[pltpu.SemaphoreType.DMA((4,))],
            cost_estimate=cost,
        )(ev, et, av, at)
        return emb_out, att_out


if __name__ == "__main__":
    # Small, deterministic inputs consistent with the module's forward:
    # question embeddings (batch, hidden) and text attentions (batch, seq).
    # hidden/seq are multiples of 128 so the column-offset DMAs land exactly on
    # (8,128) tile boundaries.
    batch, hidden, seq = 2, 256, 128
    key = jax.random.PRNGKey(0)
    k1, k2, k3, k4 = jax.random.split(key, 4)

    emb_vilbert = jax.random.normal(k1, (batch, hidden), dtype=jnp.float32)
    emb_transformer = jax.random.normal(k2, (batch, hidden), dtype=jnp.float32)
    att_vilbert = jax.random.normal(k3, (batch, seq), dtype=jnp.float32)
    att_transformer = jax.random.normal(k4, (batch, seq), dtype=jnp.float32)

    module = SimpleQuestionConcatenation(config=None)
    emb_out, att_out = module(
        emb_vilbert, att_vilbert, emb_transformer, att_transformer
    )
    jax.block_until_ready((emb_out, att_out))

    # Pure-JAX reference check (exact: the kernel is a copy).
    emb_ref = jnp.concatenate([emb_vilbert, emb_transformer], axis=-1)
    att_ref = jnp.concatenate([att_vilbert, att_transformer], axis=-1)
    assert emb_out.shape == (batch, 2 * hidden)
    assert att_out.shape == (batch, 2 * seq)
    assert jnp.array_equal(emb_out, emb_ref)
    assert jnp.array_equal(att_out, att_ref)

    print("KERNEL_OK")
</pallas_src>

<mosaic_0001>
module attributes {stable_mosaic.version = 11 : i64} {
  func.func @_concat_dma_kernel(%arg0: memref<2x256xf32, #tpu.memory_space<any>>, %arg1: memref<2x256xf32, #tpu.memory_space<any>>, %arg2: memref<2x128xf32, #tpu.memory_space<any>>, %arg3: memref<2x128xf32, #tpu.memory_space<any>>, %arg4: memref<2x512xf32, #tpu.memory_space<any>>, %arg5: memref<2x256xf32, #tpu.memory_space<any>>, %arg6: memref<4x!tpu.dma_semaphore, #tpu.memory_space<semaphore_mem>>) attributes {dimension_semantics = [], scalar_prefetch = 0 : i64, scratch_operands = 1 : i64, tpu.core_type = #tpu.core_type<tc>} {
    %c0_i32 = arith.constant 0 : i32
    %c0_i32_0 = arith.constant 0 : i32
    %c0_i32_1 = arith.constant 0 : i32
    %0 = tpu.memref_slice %arg4[%c0_i32_0, %c0_i32_1] : memref<2x512xf32, #tpu.memory_space<any>> -> memref<2x256xf32, #tpu.memory_space<any>>
    %1 = tpu.memref_slice %arg6[%c0_i32] : memref<4x!tpu.dma_semaphore, #tpu.memory_space<semaphore_mem>> -> memref<1x!tpu.dma_semaphore, #tpu.memory_space<semaphore_mem>>
    %2 = tpu.memref_squeeze %1 : memref<1x!tpu.dma_semaphore, #tpu.memory_space<semaphore_mem>> -> memref<!tpu.dma_semaphore, #tpu.memory_space<semaphore_mem>>
    tpu.enqueue_dma source(%arg0 : memref<2x256xf32, #tpu.memory_space<any>>) target(%0 : memref<2x256xf32, #tpu.memory_space<any>>) target_semaphore(%2 : memref<!tpu.dma_semaphore, #tpu.memory_space<semaphore_mem>>)
    %c1_i32 = arith.constant 1 : i32
    %c0_i32_2 = arith.constant 0 : i32
    %c256_i32 = arith.constant 256 : i32
    %3 = tpu.memref_slice %arg4[%c0_i32_2, %c256_i32] : memref<2x512xf32, #tpu.memory_space<any>> -> memref<2x256xf32, #tpu.memory_space<any>>
    %4 = tpu.memref_slice %arg6[%c1_i32] : memref<4x!tpu.dma_semaphore, #tpu.memory_space<semaphore_mem>> -> memref<1x!tpu.dma_semaphore, #tpu.memory_space<semaphore_mem>>
    %5 = tpu.memref_squeeze %4 : memref<1x!tpu.dma_semaphore, #tpu.memory_space<semaphore_mem>> -> memref<!tpu.dma_semaphore, #tpu.memory_space<semaphore_mem>>
    tpu.enqueue_dma source(%arg1 : memref<2x256xf32, #tpu.memory_space<any>>) target(%3 : memref<2x256xf32, #tpu.memory_space<any>>) target_semaphore(%5 : memref<!tpu.dma_semaphore, #tpu.memory_space<semaphore_mem>>)
    %c2_i32 = arith.constant 2 : i32
    %c0_i32_3 = arith.constant 0 : i32
    %c0_i32_4 = arith.constant 0 : i32
    %6 = tpu.memref_slice %arg5[%c0_i32_3, %c0_i32_4] : memref<2x256xf32, #tpu.memory_space<any>> -> memref<2x128xf32, #tpu.memory_space<any>>
    %7 = tpu.memref_slice %arg6[%c2_i32] : memref<4x!tpu.dma_semaphore, #tpu.memory_space<semaphore_mem>> -> memref<1x!tpu.dma_semaphore, #tpu.memory_space<semaphore_mem>>
    %8 = tpu.memref_squeeze %7 : memref<1x!tpu.dma_semaphore, #tpu.memory_space<semaphore_mem>> -> memref<!tpu.dma_semaphore, #tpu.memory_space<semaphore_mem>>
    tpu.enqueue_dma source(%arg2 : memref<2x128xf32, #tpu.memory_space<any>>) target(%6 : memref<2x128xf32, #tpu.memory_space<any>>) target_semaphore(%8 : memref<!tpu.dma_semaphore, #tpu.memory_space<semaphore_mem>>)
    %c3_i32 = arith.constant 3 : i32
    %c0_i32_5 = arith.constant 0 : i32
    %c128_i32 = arith.constant 128 : i32
    %9 = tpu.memref_slice %arg5[%c0_i32_5, %c128_i32] : memref<2x256xf32, #tpu.memory_space<any>> -> memref<2x128xf32, #tpu.memory_space<any>>
    %10 = tpu.memref_slice %arg6[%c3_i32] : memref<4x!tpu.dma_semaphore, #tpu.memory_space<semaphore_mem>> -> memref<1x!tpu.dma_semaphore, #tpu.memory_space<semaphore_mem>>
    %11 = tpu.memref_squeeze %10 : memref<1x!tpu.dma_semaphore, #tpu.memory_space<semaphore_mem>> -> memref<!tpu.dma_semaphore, #tpu.memory_space<semaphore_mem>>
    tpu.enqueue_dma source(%arg3 : memref<2x128xf32, #tpu.memory_space<any>>) target(%9 : memref<2x128xf32, #tpu.memory_space<any>>) target_semaphore(%11 : memref<!tpu.dma_semaphore, #tpu.memory_space<semaphore_mem>>)
    %c0_i32_6 = arith.constant 0 : i32
    %c0_i32_7 = arith.constant 0 : i32
    %c0_i32_8 = arith.constant 0 : i32
    %12 = tpu.memref_slice %arg4[%c0_i32_7, %c0_i32_8] : memref<2x512xf32, #tpu.memory_space<any>> -> memref<2x256xf32, #tpu.memory_space<any>>
    %13 = tpu.memref_slice %arg6[%c0_i32_6] : memref<4x!tpu.dma_semaphore, #tpu.memory_space<semaphore_mem>> -> memref<1x!tpu.dma_semaphore, #tpu.memory_space<semaphore_mem>>
    %14 = tpu.memref_squeeze %13 : memref<1x!tpu.dma_semaphore, #tpu.memory_space<semaphore_mem>> -> memref<!tpu.dma_semaphore, #tpu.memory_space<semaphore_mem>>
    tpu.wait_dma2 semaphore(%14 : memref<!tpu.dma_semaphore, #tpu.memory_space<semaphore_mem>>) src(%arg0 : memref<2x256xf32, #tpu.memory_space<any>>) dst(%12 : memref<2x256xf32, #tpu.memory_space<any>>)
    %c1_i32_9 = arith.constant 1 : i32
    %c0_i32_10 = arith.constant 0 : i32
    %c256_i32_11 = arith.constant 256 : i32
    %15 = tpu.memref_slice %arg4[%c0_i32_10, %c256_i32_11] : memref<2x512xf32, #tpu.memory_space<any>> -> memref<2x256xf32, #tpu.memory_space<any>>
    %16 = tpu.memref_slice %arg6[%c1_i32_9] : memref<4x!tpu.dma_semaphore, #tpu.memory_space<semaphore_mem>> -> memref<1x!tpu.dma_semaphore, #tpu.memory_space<semaphore_mem>>
    %17 = tpu.memref_squeeze %16 : memref<1x!tpu.dma_semaphore, #tpu.memory_space<semaphore_mem>> -> memref<!tpu.dma_semaphore, #tpu.memory_space<semaphore_mem>>
    tpu.wait_dma2 semaphore(%17 : memref<!tpu.dma_semaphore, #tpu.memory_space<semaphore_mem>>) src(%arg1 : memref<2x256xf32, #tpu.memory_space<any>>) dst(%15 : memref<2x256xf32, #tpu.memory_space<any>>)
    %c2_i32_12 = arith.constant 2 : i32
    %c0_i32_13 = arith.constant 0 : i32
    %c0_i32_14 = arith.constant 0 : i32
    %18 = tpu.memref_slice %arg5[%c0_i32_13, %c0_i32_14] : memref<2x256xf32, #tpu.memory_space<any>> -> memref<2x128xf32, #tpu.memory_space<any>>
    %19 = tpu.memref_slice %arg6[%c2_i32_12] : memref<4x!tpu.dma_semaphore, #tpu.memory_space<semaphore_mem>> -> memref<1x!tpu.dma_semaphore, #tpu.memory_space<semaphore_mem>>
    %20 = tpu.memref_squeeze %19 : memref<1x!tpu.dma_semaphore, #tpu.memory_space<semaphore_mem>> -> memref<!tpu.dma_semaphore, #tpu.memory_space<semaphore_mem>>
    tpu.wait_dma2 semaphore(%20 : memref<!tpu.dma_semaphore, #tpu.memory_space<semaphore_mem>>) src(%arg2 : memref<2x128xf32, #tpu.memory_space<any>>) dst(%18 : memref<2x128xf32, #tpu.memory_space<any>>)
    %c3_i32_15 = arith.constant 3 : i32
    %c0_i32_16 = arith.constant 0 : i32
    %c128_i32_17 = arith.constant 128 : i32
    %21 = tpu.memref_slice %arg5[%c0_i32_16, %c128_i32_17] : memref<2x256xf32, #tpu.memory_space<any>> -> memref<2x128xf32, #tpu.memory_space<any>>
    %22 = tpu.memref_slice %arg6[%c3_i32_15] : memref<4x!tpu.dma_semaphore, #tpu.memory_space<semaphore_mem>> -> memref<1x!tpu.dma_semaphore, #tpu.memory_space<semaphore_mem>>
    %23 = tpu.memref_squeeze %22 : memref<1x!tpu.dma_semaphore, #tpu.memory_space<semaphore_mem>> -> memref<!tpu.dma_semaphore, #tpu.memory_space<semaphore_mem>>
    tpu.wait_dma2 semaphore(%23 : memref<!tpu.dma_semaphore, #tpu.memory_space<semaphore_mem>>) src(%arg3 : memref<2x128xf32, #tpu.memory_space<any>>) dst(%21 : memref<2x128xf32, #tpu.memory_space<any>>)
    return
  }
}

</mosaic_0001>

<llo_original>
// kernel: tpu_custom_call.1
$region0: #{tpu_custom_call.1}
  #allocation0 [shape = 'u32[]', space=smem, size = 0x4, offset = 0x4, fixed_abs, tag = 'smem constant byte address 0x4 - core index']
  #allocation1 [shape = 'u32[144,128]{1,0:T(1,128)}', space=vmem, size = 0x12000, scoped, tag = 'internal scratch']
  #allocation2 [shape = 's32[4]{0}', space=sflag, size = 0x10, scoped, tag = 'scratch operand']
  #allocation3 [shape = 's32[]', space=sflag, size = 0x4, offset = 0, fixed_abs, tag = 'sflag constant byte address 0x0 - dummy sync flag']
  #allocation4 [shape = 'u32[0]{0}', space=smem, size = 0, offset = 0, fixed_abs, tag = 'smem constant byte address 0x0 - null']
  #allocation5 [shape = 's32[]', space=sflag, size = 0x4, offset = 0, fixed_abs, tag = 'sflag constant byte address 0x0 - dummy sync flag']
  #allocation6 [shape = 'u32[0]{0}', space=smem, size = 0, offset = 0, fixed_abs, tag = 'smem constant byte address 0x0 - null']
  #allocation7 [shape = 's32[]', space=sflag, size = 0x4, offset = 0, fixed_abs, tag = 'sflag constant byte address 0x0 - dummy sync flag']
  #allocation8 [shape = 's32[]', space=sflag, size = 0x4, offset = 0, fixed_abs, tag = 'sflag constant byte address 0x0 - dummy sync flag']
  #allocation9 [shape = 'u32[]', space=smem, size = 0x4, offset = 0x44, fixed_abs, tag = 'smem constant byte address 0x44 - assertion arg 0']
  #allocation10 [shape = 'u32[]', space=smem, size = 0x4, offset = 0x48, fixed_abs, tag = 'smem constant byte address 0x48 - assertion arg 1']
  #allocation11 [shape = 's32[]', space=sflag, size = 0x4, offset = 0, fixed_abs, tag = 'sflag constant byte address 0x0 - dummy sync flag']
  #allocation12 [shape = 's32[]', space=sflag, size = 0x4, offset = 0, fixed_abs, tag = 'sflag constant byte address 0x0 - dummy sync flag']
  %s0 = inlined_call_operand.hbm [shape: f32[2,256], index: 0, kind: input, shape index: {}]
  %s1 = inlined_call_operand.hbm [shape: f32[2,256], index: 1, kind: input, shape index: {}]
  %s2 = inlined_call_operand.vmem [shape: f32[2,128], index: 2, kind: input, shape index: {}]
  %s3 = inlined_call_operand.vmem [shape: f32[2,128], index: 3, kind: input, shape index: {}]
  %s4 = inlined_call_operand.hbm [shape: f32[2,512], index: 4, kind: output, shape index: {0}]
  %s5 = inlined_call_operand.hbm [shape: f32[2,256], index: 5, kind: output, shape index: {1}]
  %6 = xla_tuple %s4, %s5
  %s7 = sld [smem:[#allocation0]]
  $region10: #{tpu_custom_call.1} parent=0
    _
  %s9 = ssub.s32 1, %s7
  %s10 = scalar_select 0, %s9, %s7
  %s12 = sshll.u32 1, 14
  %s13 = sxor.u32 4294967295, %s12
  %s16 = sshll.u32 3, 24
  %s17 = sxor.u32 4294967295, %s16
  %s18 = sand.u32 0, %s17
  %s20 = sor.u32 %s18, 0
  %23 = dma.general %s0, 64, %s4, [#allocation2], [#allocation3], [#allocation4], %s20, 0
  %s24 = scalar_lea.hbm %s4, 64
  %s25 = scalar_lea.sflag [#allocation2], 1
  %s27 = sshll.u32 1, 14
  %s28 = sxor.u32 4294967295, %s27
  %s31 = sshll.u32 3, 24
  %s32 = sxor.u32 4294967295, %s31
  %s33 = sand.u32 0, %s32
  %s35 = sor.u32 %s33, 0
  %38 = dma.general %s1, 64, %s24, %s25, [#allocation5], [#allocation6], %s35, 0
  %s39 = scalar_lea.sflag [#allocation2], 2
  // Predicated region
  $region2: #{tpu_custom_call.1} parent=0 // pred_check
    _
  $region3: #{tpu_custom_call.1} parent=0 // pred_check_branch
    %41 = sbr.rel target = $region5
  $region4: #{tpu_custom_call.1} parent=0 // pred_region
    %42 = sst [smem:[#allocation9]] [#allocation8]
    %43 = sst [smem:[#allocation10]] [#allocation7]
  $region5: #{tpu_custom_call.1} parent=0 // pred_fallthru
    _
  %45 = shalt.err (0)
  %s47 = sshll.u32 %s2, 4
  %s48 = int_to_ptr.vmem [resolvable:$true] %s47
  %50 = dma.vmem_to_hbm [thread:$0]  %s48, 32, %s5, %s39
  %s51 = scalar_lea.hbm %s5, 32
  %s52 = scalar_lea.sflag [#allocation2], 3
  // Predicated region
  $region6: #{tpu_custom_call.1} parent=0 // pred_check
    _
  $region7: #{tpu_custom_call.1} parent=0 // pred_check_branch
    %54 = sbr.rel target = $region9
  $region8: #{tpu_custom_call.1} parent=0 // pred_region
    %55 = sst [smem:[#allocation9]] [#allocation12]
    %56 = sst [smem:[#allocation10]] [#allocation11]
  $region9: #{tpu_custom_call.1} parent=0 // pred_fallthru
    _
  %58 = shalt.err (0)
  %s60 = sshll.u32 %s3, 4
  %s61 = int_to_ptr.vmem [resolvable:$true] %s60
  %63 = dma.vmem_to_hbm [thread:$0]  %s61, 32, %s51, %s52
  %s64 = smul.u32 2, 1
  %s65 = smul.u32 %s64, 2
  %s66 = sshll.u32 %s65, 4
  %67 = dma.done [#allocation2], %s66
  %s68 = sshll.u32 %s65, 4
  %69 = dma.done %s25, %s68
  %s70 = smul.u32 %s64, 1
  %s71 = sshll.u32 %s70, 4
  %72 = dma.done %s39, %s71
  %s73 = sshll.u32 %s70, 4
  %74 = dma.done %s52, %s73
  %75 = vsyncmov [#allocation2]
  %s76 = vpop.sfrf %75
  %p77 = scmp.eq.s32.totalorder %s76, 0
  %p78 = pneg %p77
  %80 = shalt.err (%p78)
  %s81 = scalar_lea.sflag [#allocation2], 1
  %82 = vsyncmov %s81
  %s83 = vpop.sfrf %82
  %p84 = scmp.eq.s32.totalorder %s83, 0
  %p85 = pneg %p84
  %87 = shalt.err (%p85)
  %s88 = scalar_lea.sflag [#allocation2], 2
  %89 = vsyncmov %s88
  %s90 = vpop.sfrf %89
  %p91 = scmp.eq.s32.totalorder %s90, 0
  %p92 = pneg %p91
  %94 = shalt.err (%p92)
  %s95 = scalar_lea.sflag [#allocation2], 3
  %96 = vsyncmov %s95
  %s97 = vpop.sfrf %96
  %p98 = scmp.eq.s32.totalorder %s97, 0
  %p99 = pneg %p98
  %101 = shalt.err (%p99)

</llo_original>
